<compile_context>
chip_gen: v7x
topology: tpu7x:2x2x1
jax: 0.10.0
libtpu: 0.0.40
codegen_flags: <defaults>
</compile_context>

<pallas_src>
import functools

import jax
import jax.numpy as jnp
from jax.experimental import pallas as pl
from jax.experimental.pallas import tpu as pltpu

_NEG_BIG = -1e30     # finite "minus infinity" for padded vocab lanes
_ROW_ALIGN = 16      # bf16 activation tile: sublanes pack in groups of 16 rows
_LANE = 128


def _round_up(x, m):
    return ((x + m - 1) // m) * m


# ---------------------------------------------------------------------------
# Kernels
# ---------------------------------------------------------------------------
def _resident_kernel(x_ref, w_ref, b_ref, o_ref, m_sc, l_sc):
    """Full padded vocab row resident in o_ref; log-probs written in place.

    x_ref: (tm, D) bf16   w_ref: (D, tv) bf16   b_ref: (1, tv) f32
    o_ref: (tm, Vp) f32   m_sc / l_sc: (tm, 1) f32
    """
    j = pl.program_id(1)
    tv = w_ref.shape[1]

    @pl.when(j == 0)
    def _init():
        m_sc[...] = jnp.full_like(m_sc, _NEG_BIG)
        l_sc[...] = jnp.zeros_like(l_sc)

    # MXU matmul for this vocab tile (bf16 in, f32 accumulate) + bias.
    logits = jnp.dot(x_ref[...], w_ref[...],
                     preferred_element_type=jnp.float32) + b_ref[...]

    # Stage raw logits directly into the resident output block (no separate
    # (tm, Vp) scratch); 128-lane-aligned slice store.
    start = pl.multiple_of(j * tv, _LANE)
    o_ref[:, pl.ds(start, tv)] = logits

    # Online logsumexp in f32 (VPU/EUP work overlaps with the MXU/DMA stream).
    m_prev = m_sc[...]
    m_new = jnp.maximum(m_prev, jnp.max(logits, axis=-1, keepdims=True))
    l_sc[...] = l_sc[...] * jnp.exp(m_prev - m_new) + jnp.sum(
        jnp.exp(logits - m_new), axis=-1, keepdims=True)
    m_sc[...] = m_new

    @pl.when(j == pl.num_programs(1) - 1)
    def _finalize():
        lse = m_sc[...] + jnp.log(l_sc[...])
        o_ref[...] = o_ref[...] - lse   # single lane-dense normalization pass


def _streaming_kernel(x_ref, w_ref, b_ref, logits_ref, lse_ref, m_sc, l_sc):
    """Large-V / non-f32-output path: stream per-tile raw f32 logits to HBM
    (output block (tm, tv), index (i, j)) plus a per-row lse output; the final
    `logits - lse` subtraction happens in an XLA epilogue, so VMEM usage does
    not depend on the padded vocab size."""
    j = pl.program_id(1)

    @pl.when(j == 0)
    def _init():
        m_sc[...] = jnp.full_like(m_sc, _NEG_BIG)
        l_sc[...] = jnp.zeros_like(l_sc)

    logits = jnp.dot(x_ref[...], w_ref[...],
                     preferred_element_type=jnp.float32) + b_ref[...]
    logits_ref[...] = logits

    m_prev = m_sc[...]
    m_new = jnp.maximum(m_prev, jnp.max(logits, axis=-1, keepdims=True))
    l_sc[...] = l_sc[...] * jnp.exp(m_prev - m_new) + jnp.sum(
        jnp.exp(logits - m_new), axis=-1, keepdims=True)
    m_sc[...] = m_new

    @pl.when(j == pl.num_programs(1) - 1)
    def _finalize():
        lse_ref[...] = m_sc[...] + jnp.log(l_sc[...])


# ---------------------------------------------------------------------------
# Per-generation configuration
# ---------------------------------------------------------------------------
@functools.lru_cache(maxsize=1)
def _tpu_config():
    kind = ""
    try:
        kind = jax.devices()[0].device_kind.lower()
    except Exception:
        pass
    fallback = (64 if "7" in kind else 128) * 1024 * 1024   # per-TC VMEM
    try:
        vmem = int(pltpu.get_tpu_info().vmem_capacity_bytes)
        vmem = min(vmem, fallback)
    except Exception:
        vmem = fallback
    return kind, vmem


def _target_tm(kind):
    # Aim past the weight-DMA roofline knee for each generation.
    if "5" in kind:
        return 256
    if "6" in kind:
        return 512
    if "7" in kind:
        return 384
    return 256


def _derive_config(rows, d_model, vocab, out_bytes, tm_req, tv_req,
                   force_streaming, vmem_limit_req):
    kind, vmem_cap = _tpu_config()
    vmem_limit = int(vmem_limit_req) if vmem_limit_req else int(vmem_cap * 0.85)
    # Tile-planning budget: leave headroom for Mosaic internal scratch.
    budget = min(vmem_limit, int(vmem_cap * 0.66))

    # Vocab tile: big lane-dense weight DMAs, but the double-buffered bf16
    # weight tile (2 * D * tv * 2 bytes) must stay under ~1/3 of the budget.
    tv = tv_req if tv_req is not None else 4096
    tv_cap = max(_LANE, ((budget // 3) // (2 * d_model * 2)) // _LANE * _LANE)
    tv = max(_LANE, min(_round_up(min(tv, vocab), _LANE), tv_cap))
    v_pad = pl.cdiv(vocab, tv) * tv

    # Row tile: as large as VMEM allows, capped at the per-generation target
    # and at the (16-aligned) row count.
    tm_target = tm_req if tm_req is not None else _target_tm(kind)
    tm_target = _round_up(max(_ROW_ALIGN,
                              min(tm_target, _round_up(rows, _ROW_ALIGN))),
                          _ROW_ALIGN)

    fixed = 2 * d_model * tv * 2 + 2 * tv * 4              # weight + bias buffers
    per_row_res = 2 * v_pad * out_bytes + 2 * d_model * 2 + 16
    per_row_str = 2 * tv * 4 + 2 * 4 + 2 * d_model * 2 + 16

    streaming = bool(force_streaming) or out_bytes != 4
    if not streaming and (budget - fixed) // per_row_res < _ROW_ALIGN:
        streaming = True   # resident (tm, Vpad) block cannot fit VMEM
    per_row = per_row_str if streaming else per_row_res
    tm_fit = max(_ROW_ALIGN,
                 (max(budget - fixed, 0) // per_row) // _ROW_ALIGN * _ROW_ALIGN)
    tm = max(_ROW_ALIGN, min(tm_target, tm_fit))

    # v7x: two TensorCores share the 'parallel' row axis -- make sure the grid
    # has at least two row tiles when the row count allows it.
    if "7" in kind and rows >= 2 * _ROW_ALIGN:
        tm = min(tm, _round_up(pl.cdiv(rows, 2), _ROW_ALIGN))

    return tm, tv, v_pad, streaming, vmem_limit


# ---------------------------------------------------------------------------
# pallas_call wrapper
# ---------------------------------------------------------------------------
@functools.partial(
    jax.jit,
    static_argnames=("rows", "vocab", "tm", "tv", "v_pad", "streaming",
                     "out_dtype", "vmem_limit_bytes"),
)
def _generator_call(x2, wq, b2, *, rows, vocab, tm, tv, v_pad, streaming,
                    out_dtype, vmem_limit_bytes):
    rows_pad, d_model = x2.shape
    grid = (rows_pad // tm, v_pad // tv)

    in_specs = [
        pl.BlockSpec((tm, d_model), lambda i, j: (i, 0)),   # activation rows
        pl.BlockSpec((d_model, tv), lambda i, j: (0, j)),   # weight vocab tile
        pl.BlockSpec((1, tv), lambda i, j: (0, j)),         # bias vocab tile
    ]
    scratch = [pltpu.VMEM((tm, 1), jnp.float32),            # running max
               pltpu.VMEM((tm, 1), jnp.float32)]            # running sum(exp)
    compiler_params = pltpu.CompilerParams(
        dimension_semantics=("parallel", "arbitrary"),
        vmem_limit_bytes=vmem_limit_bytes,
    )

    if streaming:
        logits, lse = pl.pallas_call(
            _streaming_kernel,
            out_shape=(jax.ShapeDtypeStruct((rows_pad, v_pad), jnp.float32),
                       jax.ShapeDtypeStruct((rows_pad, 1), jnp.float32)),
            grid_spec=pltpu.PrefetchScalarGridSpec(
                num_scalar_prefetch=0,
                grid=grid,
                in_specs=in_specs,
                out_specs=[pl.BlockSpec((tm, tv), lambda i, j: (i, j)),
                           pl.BlockSpec((tm, 1), lambda i, j: (i, 0))],
                scratch_shapes=scratch,
            ),
            compiler_params=compiler_params,
        )(x2, wq, b2)
        return (logits[:rows, :vocab] - lse[:rows]).astype(out_dtype)

    out = pl.pallas_call(
        _resident_kernel,
        out_shape=jax.ShapeDtypeStruct((rows_pad, v_pad), jnp.float32),
        grid_spec=pltpu.PrefetchScalarGridSpec(
            num_scalar_prefetch=0,
            grid=grid,
            in_specs=in_specs,
            # Output block stays resident across the vocab axis; normalized
            # in place on the last vocab step (single lane-dense writeback).
            out_specs=pl.BlockSpec((tm, v_pad), lambda i, j: (i, 0)),
            scratch_shapes=scratch,
        ),
        compiler_params=compiler_params,
    )(x2, wq, b2)
    return out[:rows, :vocab].astype(out_dtype)


def generator_forward(x, w, b, *, tm=None, tv=None, out_dtype=None,
                      force_streaming=False, vmem_limit_bytes=None,
                      compute_dtype=jnp.bfloat16):
    """Generator forward: log_softmax(x @ w + b, axis=-1).

    x: (B, S, D); w: (D, V) (transpose of nn.Linear's (V, D) weight); b: (V,).
    Returns (B, S, V) log-probabilities in `out_dtype` (default: x.dtype).
    """
    B, S, D = x.shape
    V = w.shape[1]
    rows = B * S
    out_dtype = jnp.dtype(out_dtype) if out_dtype is not None else jnp.dtype(x.dtype)

    tm, tv, v_pad, streaming, vmem_limit = _derive_config(
        rows, D, V, out_dtype.itemsize, tm, tv, force_streaming,
        vmem_limit_bytes)
    rows_pad = pl.cdiv(rows, tm) * tm

    # Cast activations / weights to bf16 once here (halves their HBM traffic
    # and VMEM buffers); the MXU accumulates in f32 inside the kernel.
    x2 = x.reshape(rows, D).astype(compute_dtype)
    if rows_pad != rows:
        x2 = jnp.pad(x2, ((0, rows_pad - rows), (0, 0)))
    wq = w.astype(compute_dtype)
    b2 = b.astype(jnp.float32).reshape(1, V)
    if v_pad != V:
        wq = jnp.pad(wq, ((0, 0), (0, v_pad - V)))
        # Huge negative bias on padded lanes -> exp() == 0 in the logsumexp.
        b2 = jnp.pad(b2, ((0, 0), (0, v_pad - V)), constant_values=_NEG_BIG)

    out = _generator_call(
        x2, wq, b2, rows=rows, vocab=V, tm=tm, tv=tv, v_pad=v_pad,
        streaming=streaming, out_dtype=out_dtype, vmem_limit_bytes=vmem_limit)
    return out.reshape(B, S, V)


if __name__ == "__main__":
    # Small shapes consistent with the module: B=2, S=8, d_model=32, voc_size=128.
    B, S, D, V = 2, 8, 32, 128
    key = jax.random.PRNGKey(0)
    kx, kw, kb = jax.random.split(key, 3)

    x = jax.random.normal(kx, (B, S, D), dtype=jnp.float32)
    # Synthetic parameters matching nn.Linear shapes: W (V, D), b (V,).
    w_torch = jax.random.normal(kw, (V, D), dtype=jnp.float32) * 0.02
    b_torch = jax.random.normal(kb, (V,), dtype=jnp.float32) * 0.02
    w = w_torch.T  # kernel consumes (D, V)

    # Resident (default) path.
    out = generator_forward(x, w, b_torch)
    jax.block_until_ready(out)

    # Streaming (large-V / v7x) path, forced, to validate both code paths.
    out_stream = generator_forward(x, w, b_torch, force_streaming=True)
    jax.block_until_ready(out_stream)

    # Reference at the same precision (bf16 inputs, f32 accumulate).
    logits_ref = jnp.dot(
        x.reshape(-1, D).astype(jnp.bfloat16), w.astype(jnp.bfloat16),
        preferred_element_type=jnp.float32,
    ).reshape(B, S, V) + b_torch
    ref = jax.nn.log_softmax(logits_ref, axis=-1)

    assert out.shape == (B, S, V)
    assert out_stream.shape == (B, S, V)
    assert jnp.allclose(out, ref, atol=2e-3, rtol=2e-3), "resident path mismatch"
    assert jnp.allclose(out_stream, ref, atol=2e-3, rtol=2e-3), "streaming path mismatch"

    print("KERNEL_OK")
</pallas_src>

<mosaic_0001>
module attributes {stable_mosaic.version = 11 : i64} {
  func.func @_resident_kernel(%arg0: i32, %arg1: i32, %arg2: memref<16x32xbf16, #tpu.memory_space<vmem>>, %arg3: memref<32x128xbf16, #tpu.memory_space<vmem>>, %arg4: memref<1x128xf32, #tpu.memory_space<vmem>>, %arg5: memref<16x128xf32, #tpu.memory_space<vmem>>, %arg6: memref<16x1xf32, #tpu.memory_space<vmem>>, %arg7: memref<16x1xf32, #tpu.memory_space<vmem>>) attributes {dimension_semantics = [#tpu.dimension_semantics<parallel>, #tpu.dimension_semantics<arbitrary>], iteration_bounds = array<i64: 1, 1>, scalar_prefetch = 0 : i64, scratch_operands = 2 : i64, tpu.core_type = #tpu.core_type<tc>, window_params = [{transform_indices = @transform_0, window_bounds = array<i64: 16, 32>}, {transform_indices = @transform_1, window_bounds = array<i64: 32, 128>}, {transform_indices = @transform_2, window_bounds = array<i64: 1, 128>}, {transform_indices = @transform_3, window_bounds = array<i64: 16, 128>}]} {
    %c0_i32 = arith.constant 0 : i32
    %0 = arith.cmpi eq, %arg1, %c0_i32 : i32
    %1 = arith.extui %0 : i1 to i32
    %c0_i32_0 = arith.constant 0 : i32
    %2 = arith.cmpi ne, %1, %c0_i32_0 : i32
    scf.if %2 {
      %cst_19 = arith.constant -1.000000e+30 : f32
      %32 = vector.broadcast %cst_19 : f32 to vector<16x1xf32>
      %c0_20 = arith.constant 0 : index
      %c0_21 = arith.constant 0 : index
      %33 = vector.load %arg6[%c0_20, %c0_21] : memref<16x1xf32, #tpu.memory_space<vmem>>, vector<16x1xf32>
      tpu.vector_store %arg6[%c0_20, %c0_21], %32 {strides = array<i32>} : memref<16x1xf32, #tpu.memory_space<vmem>>, vector<16x1xf32>,
      %cst_22 = arith.constant 0.000000e+00 : f32
      %34 = vector.broadcast %cst_22 : f32 to vector<16x1xf32>
      %c0_23 = arith.constant 0 : index
      %c0_24 = arith.constant 0 : index
      %35 = vector.load %arg7[%c0_23, %c0_24] : memref<16x1xf32, #tpu.memory_space<vmem>>, vector<16x1xf32>
      tpu.vector_store %arg7[%c0_23, %c0_24], %34 {strides = array<i32>} : memref<16x1xf32, #tpu.memory_space<vmem>>, vector<16x1xf32>,
    } else {
    }
    %c0 = arith.constant 0 : index
    %c0_1 = arith.constant 0 : index
    %3 = vector.load %arg2[%c0, %c0_1] : memref<16x32xbf16, #tpu.memory_space<vmem>>, vector<16x32xbf16>
    %c0_2 = arith.constant 0 : index
    %c0_3 = arith.constant 0 : index
    %4 = vector.load %arg3[%c0_2, %c0_3] : memref<32x128xbf16, #tpu.memory_space<vmem>>, vector<32x128xbf16>
    %cst = arith.constant dense<0.000000e+00> : vector<16x128xf32>
    %5 = tpu.matmul %3, %4, %cst {dimension_numbers = #tpu.dot_dimension_numbers<[1], [0], [0], [1], [0, 0, 1, 1], [], []>} : vector<16x32xbf16>, vector<32x128xbf16>, vector<16x128xf32> -> vector<16x128xf32>
    %c0_4 = arith.constant 0 : index
    %c0_5 = arith.constant 0 : index
    %6 = vector.load %arg4[%c0_4, %c0_5] : memref<1x128xf32, #tpu.memory_space<vmem>>, vector<1x128xf32>
    %7 = vector.broadcast %6 : vector<1x128xf32> to vector<16x128xf32>
    %8 = arith.addf %5, %7 : vector<16x128xf32>
    %c128_i32 = arith.constant 128 : i32
    %9 = arith.muli %arg1, %c128_i32 : i32
    %10 = tpu.assume_multiple %9, 128 : i32
    %c0_6 = arith.constant 0 : index
    %11 = arith.index_cast %10 : i32 to index
    %12 = vector.load %arg5[%c0_6, %11] : memref<16x128xf32, #tpu.memory_space<vmem>>, vector<16x128xf32>
    tpu.vector_store %arg5[%c0_6, %11], %8 {strides = array<i32>} : memref<16x128xf32, #tpu.memory_space<vmem>>, vector<16x128xf32>,
    %c0_7 = arith.constant 0 : index
    %c0_8 = arith.constant 0 : index
    %13 = vector.load %arg6[%c0_7, %c0_8] : memref<16x1xf32, #tpu.memory_space<vmem>>, vector<16x1xf32>
    %cst_9 = arith.constant dense<0xFF800000> : vector<16xf32>
    %14 = vector.multi_reduction <maximumf>, %8, %cst_9 [1] : vector<16x128xf32> to vector<16xf32>
    %15 = vector.shape_cast %14 : vector<16xf32> to vector<16x1xf32>
    %16 = arith.maximumf %13, %15 : vector<16x1xf32>
    %c0_10 = arith.constant 0 : index
    %c0_11 = arith.constant 0 : index
    %17 = vector.load %arg7[%c0_10, %c0_11] : memref<16x1xf32, #tpu.memory_space<vmem>>, vector<16x1xf32>
    %18 = arith.subf %13, %16 : vector<16x1xf32>
    %19 = math.exp %18 : vector<16x1xf32>
    %20 = arith.mulf %17, %19 : vector<16x1xf32>
    %21 = vector.broadcast %16 : vector<16x1xf32> to vector<16x128xf32>
    %22 = arith.subf %8, %21 : vector<16x128xf32>
    %23 = math.exp %22 : vector<16x128xf32>
    %cst_12 = arith.constant dense<0.000000e+00> : vector<16xf32>
    %24 = vector.multi_reduction <add>, %23, %cst_12 [1] : vector<16x128xf32> to vector<16xf32>
    %25 = vector.shape_cast %24 : vector<16xf32> to vector<16x1xf32>
    %26 = arith.addf %20, %25 : vector<16x1xf32>
    %c0_13 = arith.constant 0 : index
    %c0_14 = arith.constant 0 : index
    %27 = vector.load %arg7[%c0_13, %c0_14] : memref<16x1xf32, #tpu.memory_space<vmem>>, vector<16x1xf32>
    tpu.vector_store %arg7[%c0_13, %c0_14], %26 {strides = array<i32>} : memref<16x1xf32, #tpu.memory_space<vmem>>, vector<16x1xf32>,
    %c0_15 = arith.constant 0 : index
    %c0_16 = arith.constant 0 : index
    %28 = vector.load %arg6[%c0_15, %c0_16] : memref<16x1xf32, #tpu.memory_space<vmem>>, vector<16x1xf32>
    tpu.vector_store %arg6[%c0_15, %c0_16], %16 {strides = array<i32>} : memref<16x1xf32, #tpu.memory_space<vmem>>, vector<16x1xf32>,
    %c0_i32_17 = arith.constant 0 : i32
    %29 = arith.cmpi eq, %arg1, %c0_i32_17 : i32
    %30 = arith.extui %29 : i1 to i32
    %c0_i32_18 = arith.constant 0 : i32
    %31 = arith.cmpi ne, %30, %c0_i32_18 : i32
    scf.if %31 {
      %c0_19 = arith.constant 0 : index
      %c0_20 = arith.constant 0 : index
      %32 = vector.load %arg6[%c0_19, %c0_20] : memref<16x1xf32, #tpu.memory_space<vmem>>, vector<16x1xf32>
      %c0_21 = arith.constant 0 : index
      %c0_22 = arith.constant 0 : index
      %33 = vector.load %arg7[%c0_21, %c0_22] : memref<16x1xf32, #tpu.memory_space<vmem>>, vector<16x1xf32>
      %34 = math.log %33 : vector<16x1xf32>
      %35 = arith.addf %32, %34 : vector<16x1xf32>
      %c0_23 = arith.constant 0 : index
      %c0_24 = arith.constant 0 : index
      %36 = vector.load %arg5[%c0_23, %c0_24] : memref<16x128xf32, #tpu.memory_space<vmem>>, vector<16x128xf32>
      %37 = vector.broadcast %35 : vector<16x1xf32> to vector<16x128xf32>
      %38 = arith.subf %36, %37 : vector<16x128xf32>
      %c0_25 = arith.constant 0 : index
      %c0_26 = arith.constant 0 : index
      %39 = vector.load %arg5[%c0_25, %c0_26] : memref<16x128xf32, #tpu.memory_space<vmem>>, vector<16x128xf32>
      tpu.vector_store %arg5[%c0_25, %c0_26], %38 {strides = array<i32>} : memref<16x128xf32, #tpu.memory_space<vmem>>, vector<16x128xf32>,
    } else {
    }
    return
  }
  func.func @transform_0(%arg0: i32, %arg1: i32) -> (i32, i32) {
    %c0_i32 = arith.constant 0 : i32
    %c0_i32_0 = arith.constant 0 : i32
    return %arg0, %c0_i32 : i32, i32
  }
  func.func @transform_1(%arg0: i32, %arg1: i32) -> (i32, i32) {
    %c0_i32 = arith.constant 0 : i32
    %c0_i32_0 = arith.constant 0 : i32
    return %c0_i32, %arg1 : i32, i32
  }
  func.func @transform_2(%arg0: i32, %arg1: i32) -> (i32, i32) {
    %c0_i32 = arith.constant 0 : i32
    %c0_i32_0 = arith.constant 0 : i32
    return %c0_i32, %arg1 : i32, i32
  }
  func.func @transform_3(%arg0: i32, %arg1: i32) -> (i32, i32) {
    %c0_i32 = arith.constant 0 : i32
    %c0_i32_0 = arith.constant 0 : i32
    return %arg0, %c0_i32 : i32, i32
  }
}

</mosaic_0001>

<llo_original>
// kernel: _generator_call.1
$region0: #{_generator_call.1}
  #allocation0 [shape = 'u32[]', space=smem, size = 0x4, offset = 0x4, fixed_abs, tag = 'smem constant byte address 0x4 - core index']
  #allocation1 [shape = 'u32[144,128]{1,0:T(1,128)}', space=vmem, size = 0x12000, scoped, tag = 'internal scratch']
  #allocation2 [shape = 'f32[16,1]{1,0:T(8,128)}', space=vmem, size = 0x2000, scoped, tag = 'scratch operand']
  #allocation3 [shape = 'f32[16,1]{1,0:T(8,128)}', space=vmem, size = 0x2000, scoped, tag = 'scratch operand']
  %s0 = inlined_call_operand.hbm [shape: bf16[16,32], index: 0, kind: input, shape index: {}]
  %s1 = inlined_call_operand.hbm [shape: bf16[32,128], index: 1, kind: input, shape index: {}]
  %s2 = inlined_call_operand.hbm [shape: f32[1,128], index: 2, kind: input, shape index: {}]
  %s3 = inlined_call_operand.hbm [shape: f32[16,128], index: 3, kind: output, shape index: {}]
  %s4 = sld [smem:[#allocation0]]
  $region42: #{_generator_call.1} parent=0
    _
  %s6 = ssub.s32 1, %s4
  %s7 = scalar_select 0, %s6, %s4
  $region1: #{_generator_call.1} parent=0
    #allocation4 [shape = 'u8[4096]{0}', space=vmem, size = 0x1000, scoped, tag = 'input window, operand 0, single buffered']
    #allocation5 [shape = 's32[1]{0}', space=sflag, size = 0x4, scoped, tag = 'scoped memory for _generator_call.1']
    #allocation6 [shape = 's32[1]{0}', space=sflag, size = 0x4, scoped, tag = 'scoped memory for _generator_call.1']
    #allocation7 [shape = 'u8[8192]{0}', space=vmem, size = 0x2000, scoped, tag = 'input window, operand 1, single buffered']
    #allocation8 [shape = 's32[1]{0}', space=sflag, size = 0x4, scoped, tag = 'scoped memory for _generator_call.1']
    #allocation9 [shape = 'u8[512]{0}', space=vmem, size = 0x400, scoped, tag = 'input window, operand 2, single buffered']
    #allocation10 [shape = 'u8[8192]{0}', space=vmem, size = 0x2000, scoped, tag = 'output window, operand 0, single buffered']
    %8 = vsyncpa [#allocation5], 0
    %9 = vsyncpa [#allocation8], 0
    %10 = vsyncpa [#allocation6], 0
    // Predicated region
    $region2: #{_generator_call.1} parent=1 // pred_check
      _
    $region3: #{_generator_call.1} parent=1 // pred_check_branch
      %12 = sbr.rel (0) target = $region5
    $region4: #{_generator_call.1} parent=1 // pred_region
      %s14 = ssub.s32 128, 128
      %15 = vsyncadd [#allocation5], %s14
      %s16 = sshll.u32 [#allocation4], 4
      %s17 = int_to_ptr.vmem [resolvable:$true] %s16
      %22 = dma.hbm_to_vmem [thread:$0]  %s0, 128, %s17, [#allocation5], 64, 64, 4
    $region5: #{_generator_call.1} parent=1 // pred_fallthru
      _
    // Predicated region
    $region6: #{_generator_call.1} parent=1 // pred_check
      _
    $region7: #{_generator_call.1} parent=1 // pred_check_branch
      %24 = sbr.rel (0) target = $region9
    $region8: #{_generator_call.1} parent=1 // pred_region
      %s26 = ssub.s32 256, 256
      %27 = vsyncadd [#allocation8], %s26
      %s28 = sshll.u32 [#allocation7], 4
      %s29 = int_to_ptr.vmem [resolvable:$true] %s28
      %34 = dma.hbm_to_vmem [thread:$0]  %s1, 256, %s29, [#allocation8], 64, 64, 4
    $region9: #{_generator_call.1} parent=1 // pred_fallthru
      _
    // Predicated region
    $region10: #{_generator_call.1} parent=1 // pred_check
      _
    $region11: #{_generator_call.1} parent=1 // pred_check_branch
      %36 = sbr.rel (0) target = $region13
    $region12: #{_generator_call.1} parent=1 // pred_region
      %s38 = ssub.s32 16, 16
      %39 = vsyncadd [#allocation8], %s38
      %s41 = sshll.u32 [#allocation9], 4
      %s42 = int_to_ptr.vmem [resolvable:$true] %s41
      %44 = dma.hbm_to_vmem [thread:$0]  %s2, 16, %s42, [#allocation8]
    $region13: #{_generator_call.1} parent=1 // pred_fallthru
      _
    // Predicated region
    $region14: #{_generator_call.1} parent=1 // pred_check
      _
    $region15: #{_generator_call.1} parent=1 // pred_check_branch
      %46 = sbr.rel (0) target = $region17
    $region16: #{_generator_call.1} parent=1 // pred_region
      %47 = dma.done [#allocation5], 128
    $region17: #{_generator_call.1} parent=1 // pred_fallthru
      _
    // Predicated region
    $region18: #{_generator_call.1} parent=1 // pred_check
      _
    $region19: #{_generator_call.1} parent=1 // pred_check_branch
      %49 = sbr.rel (0) target = $region21
    $region20: #{_generator_call.1} parent=1 // pred_region
      %50 = dma.done [#allocation8], 256
    $region21: #{_generator_call.1} parent=1 // pred_fallthru
      _
    // Predicated region
    $region22: #{_generator_call.1} parent=1 // pred_check
      _
    $region23: #{_generator_call.1} parent=1 // pred_check_branch
      %52 = sbr.rel (0) target = $region25
    $region24: #{_generator_call.1} parent=1 // pred_region
      %53 = dma.done [#allocation8], 16
    $region25: #{_generator_call.1} parent=1 // pred_fallthru
      _
    %p55 = scmp.eq.s32.totalorder 0, 0
    // Predicated region
    $region26: #{_generator_call.1} parent=1 // pred_check
      %p56 = pneg %p55
    $region27: #{_generator_call.1} parent=1 // pred_check_branch
      %58 = sbr.rel (%p56) target = $region29
    $region28: #{_generator_call.1} parent=1 // pred_region
      %vm59 = vcmask 7168
      %60 = vst.msk [vmem:[#allocation2] sm:$0xff] %vm59, -1e+30
      %61 = vst.msk [vmem:[#allocation2 + $0x8] sm:$0xff] %vm59, -1e+30
      %62 = vst.msk [vmem:[#allocation3] sm:$0xff] %vm59, 0.0
      %63 = vst.msk [vmem:[#allocation3 + $0x8] sm:$0xff] %vm59, 0.0
    $region29: #{_generator_call.1} parent=1 // pred_fallthru
      _
    %v64 = vld [vmem:[#allocation4] sm:$0xf]
    %v65 = vld [vmem:[#allocation4 + $0x4] sm:$0xf]
    %v66 = vld [vmem:[#allocation7] sm:$0xf]
    %v67 = vld [vmem:[#allocation7 + $0x4] sm:$0xf]
    %v68 = vld [vmem:[#allocation7 + $0x8] sm:$0xf]
    %v69 = vld [vmem:[#allocation7 + $0xc] sm:$0xf]
    %v70 = vld [vmem:[#allocation9] sm:$0x1]
    %v72 = vlaneseq
    %v73 = vshrl.u32 %v72, 7
    %v74 = vsub.s32 0, %v73
    %v75 = vrot.slane %v70, %v74
    %v79 = vunpack.c.l.b16 %v64
    %v80 = vunpack.c.l.b16 %v65
    %v81 = vpack.c.b16 %v80, %v79
    %v86 = vunpack.c.l.b16 %v66
    %v87 = vunpack.c.l.b16 %v67
    %v88 = vunpack.c.l.b16 %v68
    %v89 = vunpack.c.l.b16 %v69
    %v90 = vpack.c.b16 %v87, %v86
    %v91 = vpack.c.b16 %v89, %v88
    %vm94 = vcmask 261120
    %v96 = vsel %vm94, %v81, 0
    %98 = vmatprep.subr.bf16.mxu0 0
    %99 = vmatpush1.bf16.msra.mxu0 %v90
    %100 = vmatprep.subr.bf16.mxu0 0
    %101 = vmatpush1.bf16.msra.mxu0 %v91
    %102 = vmatprep.subr.bf16.mxu0 0
    %103 = vmatpush1.bf16.msra.mxu0 0
    %104 = vmatprep.subr.bf16.mxu0 0
    %105 = vmatpush1.bf16.msra.mxu0 0
    %106 = vmatprep.subr.bf16.mxu0 0
    %107 = vmatpush1.bf16.msra.mxu0 0
    %108 = vmatprep.subr.bf16.mxu0 0
    %109 = vmatpush1.bf16.msra.mxu0 0
    %110 = vmatprep.subr.bf16.mxu0 0
    %111 = vmatpush1.bf16.msra.mxu0 0
    %112 = vmatprep.subr.bf16.mxu0 0
    %113 = vmatpush1.bf16.msra.mxu0 0
    %114 = vmatprep.subr.bf16.mxu0 0
    %115 = vmatpush1.bf16.msra.mxu0 0
    %116 = vmatprep.subr.bf16.mxu0 0
    %117 = vmatpush1.bf16.msra.mxu0 0
    %118 = vmatprep.subr.bf16.mxu0 0
    %119 = vmatpush1.bf16.msra.mxu0 0
    %120 = vmatprep.subr.bf16.mxu0 0
    %121 = vmatpush1.bf16.msra.mxu0 0
    %122 = vmatprep.subr.bf16.mxu0 0
    %123 = vmatpush1.bf16.msra.mxu0 0
    %124 = vmatprep.subr.bf16.mxu0 0
    %125 = vmatpush1.bf16.msra.mxu0 0
    %126 = vmatprep.subr.bf16.mxu0 0
    %127 = vmatpush1.bf16.msra.mxu0 0
    %128 = vmatprep.subr.bf16.mxu0 0
    %129 = vmatpush1.bf16.msra.mxu0 0
    %130 = vmatprep.mubr.bf16.mxu0 0
    %131 = vmatmul.mubr.bf16.gmra.mrb[0].mxu0 %v96
    %v132 = vpop.f32.mrb[0].mxu0
    %v133 = vadd.f32 %v75, %v132
    %v134 = vpop.f32.mrb[0].mxu0
    %v135 = vpop.f32.mrb[0].mxu0
    %v136 = vadd.f32 %v75, %v135
    %v137 = vpop.f32.mrb[0].mxu0
    %138 = vdwg.mxu0
    %s139 = smul.u32 0, 128
    %s140 = sshra.s32 %s139, 7
    %s141 = sand.u32 %s139, 127
    %s142 = scalar_lea.vmem [#allocation10], %s140
    %143 = vst [vmem:[%s142] sm:$0xff] %v133
    %144 = vst [vmem:[%s142 + $0x8] sm:$0xff] %v136
    %v145 = vld [vmem:[#allocation2] sm:$0xff]
    %v146 = vld [vmem:[#allocation2 + $0x8] sm:$0xff]
    %147 = vmax.xlane.f32.xlu0 %v133
    %v148 = vpop.xlane.xlu0 %147
    %149 = vmax.xlane.f32.xlu0 %v136
    %v150 = vpop.xlane.xlu0 %149
    %v151 = vmax.f32 %v145, %v148
    %v152 = vmax.f32 %v146, %v150
    %v153 = vld [vmem:[#allocation3] sm:$0xff]
    %v154 = vld [vmem:[#allocation3 + $0x8] sm:$0xff]
    %v155 = vsub.f32 %v145, %v151
    %v156 = vsub.f32 %v146, %v152
    %v157 = vmul.f32 %v155, 1.442695
    %v158 = vpow.pop %v157
    %v159 = vmul.f32 %v156, 1.442695
    %v160 = vpow.pop %v159
    %v161 = vmul.f32 %v153, %v158
    %v162 = vmul.f32 %v154, %v160
    %164 = vset.pattern.permute.xlu0 0
    %165 = vperm.xlu0 %164, %v151
    %v166 = vpop.permute.xlu0 %165
    %169 = vset.pattern.permute.xlu0 0
    %170 = vperm.xlu0 %169, %v152
    %v171 = vpop.permute.xlu0 %170
    %v173 = vsub.f32 %v133, %v166
    %v174 = vsub.f32 %v136, %v171
    %v175 = vmul.f32 %v173, 1.442695
    %v176 = vpow.pop %v175
    %v177 = vmul.f32 %v174, 1.442695
    %v178 = vpow.pop %v177
    %179 = vadd.xlane.f32.xlu0 %v176
    %v180 = vpop.xlane.xlu0 %179
    %181 = vadd.xlane.f32.xlu0 %v178
    %v182 = vpop.xlane.xlu0 %181
    %v183 = vadd.f32 %v161, %v180
    %v184 = vadd.f32 %v162, %v182
    %vm185 = vcmask 7168
    %186 = vst.msk [vmem:[#allocation3] sm:$0xff] %vm185, %v183
    %187 = vst.msk [vmem:[#allocation3 + $0x8] sm:$0xff] %vm185, %v184
    %188 = vst.msk [vmem:[#allocation2] sm:$0xff] %vm185, %v151
    %189 = vst.msk [vmem:[#allocation2 + $0x8] sm:$0xff] %vm185, %v152
    // Predicated region
    $region30: #{_generator_call.1} parent=1 // pred_check
      %p190 = pneg %p55
    $region31: #{_generator_call.1} parent=1 // pred_check_branch
      %192 = sbr.rel (%p190) target = $region33
    $region32: #{_generator_call.1} parent=1 // pred_region
      %v193 = vld [vmem:[#allocation2] sm:$0xff]
      %v194 = vld [vmem:[#allocation2 + $0x8] sm:$0xff]
      %v195 = vld [vmem:[#allocation3] sm:$0xff]
      %v196 = vld [vmem:[#allocation3 + $0x8] sm:$0xff]
      %v197 = vlog2.pop %v195
      %v198 = vmul.f32 %v197, 0.6931472
      %v199 = vlog2.pop %v196
      %v200 = vmul.f32 %v199, 0.6931472
      %v201 = vadd.f32 %v193, %v198
      %v202 = vadd.f32 %v194, %v200
      %v203 = vld [vmem:[#allocation10] sm:$0xff]
      %v204 = vld [vmem:[#allocation10 + $0x8] sm:$0xff]
      %206 = vset.pattern.permute.xlu0 0
      %207 = vperm.xlu0 %206, %v201
      %v208 = vpop.permute.xlu0 %207
      %211 = vset.pattern.permute.xlu0 0
      %212 = vperm.xlu0 %211, %v202
      %v213 = vpop.permute.xlu0 %212
      %v215 = vsub.f32 %v203, %v208
      %v216 = vsub.f32 %v204, %v213
      %217 = vst [vmem:[#allocation10] sm:$0xff] %v215
      %218 = vst [vmem:[#allocation10 + $0x8] sm:$0xff] %v216
    $region33: #{_generator_call.1} parent=1 // pred_fallthru
      _
    // Predicated region
    $region34: #{_generator_call.1} parent=1 // pred_check
      _
    $region35: #{_generator_call.1} parent=1 // pred_check_branch
      %220 = sbr.rel (0) target = $region37
    $region36: #{_generator_call.1} parent=1 // pred_region
      %s222 = ssub.s32 256, 256
      %223 = vsyncadd [#allocation6], %s222
      %s224 = sshll.u32 [#allocation10], 4
      %s225 = int_to_ptr.vmem [resolvable:$true] %s224
      %230 = dma.vmem_to_hbm [thread:$0]  %s225, 256, %s3, [#allocation6], 128, 128, 8
    $region37: #{_generator_call.1} parent=1 // pred_fallthru
      _
    // Predicated region
    $region38: #{_generator_call.1} parent=1 // pred_check
      _
    $region39: #{_generator_call.1} parent=1 // pred_check_branch
      %232 = sbr.rel (0) target = $region41
    $region40: #{_generator_call.1} parent=1 // pred_region
      %233 = dma.done [#allocation6], 256
    $region41: #{_generator_call.1} parent=1 // pred_fallthru
      _
    %234 = vsyncpa [#allocation5], 1
    %235 = vsyncpa [#allocation8], 1
    %236 = vsyncpa [#allocation6], 1

</llo_original>
